<compile_context>
chip_gen: v7x
topology: tpu7x:2x2x1
jax: 0.10.0
libtpu: 0.0.40
codegen_flags: <defaults>
</compile_context>

<pallas_src>
import jax
import jax.numpy as jnp
from jax.experimental import pallas as pl
from jax.experimental.pallas import tpu as pltpu


def _round_up(n: int, m: int) -> int:
    return ((n + m - 1) // m) * m


def _highway_stack_kernel(x_ref, wh_ref, wg_ref, bh_ref, bg_ref, o_ref,
                          act_ref):
    """Grid = (batch_tiles, num_layers); one invocation = one layer on one
    batch tile.  The running activation is carried in `act_ref` (VMEM)."""
    layer = pl.program_id(1)

    @pl.when(layer == 0)
    def _():
        act_ref[...] = x_ref[...].astype(jnp.float32)

    cur = act_ref[...]                                        # (tb, Dp) f32

    # Two lane-dense (Dp, Dp) matmuls on the MXU with f32 accumulation.
    h = jnp.dot(cur, wh_ref[0], preferred_element_type=jnp.float32)
    h = h + bh_ref[0]
    g = jnp.dot(cur, wg_ref[0], preferred_element_type=jnp.float32)
    g = g + bg_ref[0]

    h = jnp.maximum(h, 0.0)                                   # relu (VPU)
    gate = jax.nn.sigmoid(g)                                  # exp -> EUP slot

    # gate * cur + (1 - gate) * h  ==  h + gate * (cur - h)
    new = h + gate * (cur - h)
    act_ref[...] = new

    @pl.when(layer == pl.num_programs(1) - 1)
    def _():
        o_ref[...] = new.astype(o_ref.dtype)


def highway_forward(x, w_h, w_g, b_h, b_g, *, batch_tile: int = 256):
    """Fused highway stack.

    x   : (B, D)
    w_h : (L, D, D)  nonlinear-part weights  (projection is x @ w_h[l])
    w_g : (L, D, D)  gate weights
    b_h : (L, D)
    b_g : (L, D)     (gate bias; initialized to 1 as in the PyTorch module)
    """
    B, D = x.shape
    L = w_h.shape[0]
    assert w_h.shape == (L, D, D) and w_g.shape == (L, D, D)
    assert b_h.shape == (L, D) and b_g.shape == (L, D)

    # Lane-align the feature dim, 8-align / tile the batch dim.
    Dp = _round_up(D, 128)
    tb = min(_round_up(B, 8), batch_tile)
    Bp = _round_up(B, tb)

    dt = x.dtype
    xp = jnp.zeros((Bp, Dp), dt).at[:B, :D].set(x)
    whp = jnp.zeros((L, Dp, Dp), w_h.dtype).at[:, :D, :D].set(w_h)
    wgp = jnp.zeros((L, Dp, Dp), w_g.dtype).at[:, :D, :D].set(w_g)
    bhp = jnp.zeros((L, 1, Dp), b_h.dtype).at[:, 0, :D].set(b_h)
    bgp = jnp.zeros((L, 1, Dp), b_g.dtype).at[:, 0, :D].set(b_g)

    grid = (Bp // tb, L)

    itemsize = jnp.dtype(jnp.float32).itemsize
    cost = pl.CostEstimate(
        flops=2 * Bp * Dp * (2 * Dp) * L,
        transcendentals=Bp * Dp * L,
        bytes_accessed=(whp.size + wgp.size + bhp.size + bgp.size
                        + 2 * Bp * Dp) * itemsize,
    )

    out = pl.pallas_call(
        _highway_stack_kernel,
        out_shape=jax.ShapeDtypeStruct((Bp, Dp), dt),
        grid_spec=pltpu.PrefetchScalarGridSpec(
            num_scalar_prefetch=0,
            grid=grid,
            in_specs=[
                pl.BlockSpec((tb, Dp), lambda i, l: (i, 0)),        # x tile
                pl.BlockSpec((1, Dp, Dp), lambda i, l: (l, 0, 0)),  # W_h[l]
                pl.BlockSpec((1, Dp, Dp), lambda i, l: (l, 0, 0)),  # W_g[l]
                pl.BlockSpec((1, 1, Dp), lambda i, l: (l, 0, 0)),   # b_h[l]
                pl.BlockSpec((1, 1, Dp), lambda i, l: (l, 0, 0)),   # b_g[l]
            ],
            out_specs=pl.BlockSpec((tb, Dp), lambda i, l: (i, 0)),
            scratch_shapes=[pltpu.VMEM((tb, Dp), jnp.float32)],
        ),
        compiler_params=pltpu.CompilerParams(
            # Batch tiles shard across TensorCores (v7x megacore); the layer
            # axis carries the activation dependency -> sequential.
            dimension_semantics=("parallel", "arbitrary"),
            # Explicit limit with headroom vs v7x's 64 MiB physical VMEM.
            vmem_limit_bytes=48 * 1024 * 1024,
        ),
        cost_estimate=cost,
    )(xp, whp, wgp, bhp, bgp)

    return out[:B, :D]


def init_highway_params(key, input_dim: int, num_layers: int):
    """Parameters mirroring the module __init__ (gate bias filled with 1).

    Equivalent to torch.nn.Linear(D, 2D) per layer with the weight split as
    W_h = weight[:D, :].T, W_g = weight[D:, :].T (so projection is x @ W)."""
    w_h, w_g, b_h, b_g = [], [], [], []
    for _ in range(num_layers):
        key, k1, k2, k3 = jax.random.split(key, 4)
        w_h.append(jax.random.normal(k1, (input_dim, input_dim),
                                     dtype=jnp.float32) * 0.05)
        w_g.append(jax.random.normal(k2, (input_dim, input_dim),
                                     dtype=jnp.float32) * 0.05)
        b_h.append(jax.random.normal(k3, (input_dim,),
                                     dtype=jnp.float32) * 0.05)
        b_g.append(jnp.ones((input_dim,), dtype=jnp.float32))  # bias[D:] = 1
    return (jnp.stack(w_h), jnp.stack(w_g), jnp.stack(b_h), jnp.stack(b_g))


def highway_reference(x, w_h, w_g, b_h, b_g):
    """Pure-JAX reference matching Highway.forward semantics."""
    cur = x
    for l in range(w_h.shape[0]):
        nonlinear = jax.nn.relu(cur @ w_h[l] + b_h[l])
        gate = jax.nn.sigmoid(cur @ w_g[l] + b_g[l])
        cur = gate * cur + (1.0 - gate) * nonlinear
    return cur


if __name__ == "__main__":
    batch = 8
    input_dim = 32
    num_layers = 2

    key = jax.random.PRNGKey(0)
    key, xk = jax.random.split(key)
    x = jax.random.normal(xk, (batch, input_dim), dtype=jnp.float32)

    w_h, w_g, b_h, b_g = init_highway_params(key, input_dim, num_layers)

    out = highway_forward(x, w_h, w_g, b_h, b_g)
    out = jax.block_until_ready(out)

    ref = highway_reference(x, w_h, w_g, b_h, b_g)
    assert out.shape == (batch, input_dim)
    assert jnp.allclose(out, ref, atol=1e-5, rtol=1e-5), "mismatch vs reference"

    print("KERNEL_OK")
</pallas_src>

<mosaic_0001>
module attributes {stable_mosaic.version = 11 : i64} {
  func.func @_highway_stack_kernel(%arg0: i32, %arg1: i32, %arg2: memref<8x128xf32, #tpu.memory_space<vmem>>, %arg3: memref<1x128x128xf32, #tpu.memory_space<vmem>>, %arg4: memref<1x128x128xf32, #tpu.memory_space<vmem>>, %arg5: memref<1x1x128xf32, #tpu.memory_space<vmem>>, %arg6: memref<1x1x128xf32, #tpu.memory_space<vmem>>, %arg7: memref<8x128xf32, #tpu.memory_space<vmem>>, %arg8: memref<8x128xf32, #tpu.memory_space<vmem>>) attributes {dimension_semantics = [#tpu.dimension_semantics<parallel>, #tpu.dimension_semantics<arbitrary>], iteration_bounds = array<i64: 1, 2>, scalar_prefetch = 0 : i64, scratch_operands = 1 : i64, tpu.core_type = #tpu.core_type<tc>, window_params = [{transform_indices = @transform_0, window_bounds = array<i64: 8, 128>}, {transform_indices = @transform_1, window_bounds = array<i64: 1, 128, 128>}, {transform_indices = @transform_2, window_bounds = array<i64: 1, 128, 128>}, {transform_indices = @transform_3, window_bounds = array<i64: 1, 1, 128>}, {transform_indices = @transform_4, window_bounds = array<i64: 1, 1, 128>}, {transform_indices = @transform_5, window_bounds = array<i64: 8, 128>}]} {
    %c0_i32 = arith.constant 0 : i32
    %0 = arith.cmpi eq, %arg1, %c0_i32 : i32
    %1 = arith.extui %0 : i1 to i32
    %c0_i32_0 = arith.constant 0 : i32
    %2 = arith.cmpi ne, %1, %c0_i32_0 : i32
    scf.if %2 {
      %c0_20 = arith.constant 0 : index
      %c0_21 = arith.constant 0 : index
      %32 = vector.load %arg2[%c0_20, %c0_21] : memref<8x128xf32, #tpu.memory_space<vmem>>, vector<8x128xf32>
      %c0_22 = arith.constant 0 : index
      %c0_23 = arith.constant 0 : index
      %33 = vector.load %arg8[%c0_22, %c0_23] : memref<8x128xf32, #tpu.memory_space<vmem>>, vector<8x128xf32>
      tpu.vector_store %arg8[%c0_22, %c0_23], %32 {strides = array<i32>} : memref<8x128xf32, #tpu.memory_space<vmem>>, vector<8x128xf32>,
    } else {
    }
    %c0 = arith.constant 0 : index
    %c0_1 = arith.constant 0 : index
    %3 = vector.load %arg8[%c0, %c0_1] : memref<8x128xf32, #tpu.memory_space<vmem>>, vector<8x128xf32>
    %c0_2 = arith.constant 0 : index
    %c0_3 = arith.constant 0 : index
    %c0_4 = arith.constant 0 : index
    %4 = vector.load %arg3[%c0_2, %c0_3, %c0_4] : memref<1x128x128xf32, #tpu.memory_space<vmem>>, vector<1x128x128xf32>
    %5 = vector.shape_cast %4 : vector<1x128x128xf32> to vector<128x128xf32>
    %cst = arith.constant dense<0.000000e+00> : vector<8x128xf32>
    %6 = tpu.matmul %3, %5, %cst {dimension_numbers = #tpu.dot_dimension_numbers<[1], [0], [0], [1], [0, 0, 1, 1], [], []>} : vector<8x128xf32>, vector<128x128xf32>, vector<8x128xf32> -> vector<8x128xf32>
    %c0_5 = arith.constant 0 : index
    %c0_6 = arith.constant 0 : index
    %c0_7 = arith.constant 0 : index
    %7 = vector.load %arg5[%c0_5, %c0_6, %c0_7] : memref<1x1x128xf32, #tpu.memory_space<vmem>>, vector<1x1x128xf32>
    %8 = vector.shape_cast %7 : vector<1x1x128xf32> to vector<1x128xf32>
    %9 = vector.broadcast %8 : vector<1x128xf32> to vector<8x128xf32>
    %10 = arith.addf %6, %9 : vector<8x128xf32>
    %c0_8 = arith.constant 0 : index
    %c0_9 = arith.constant 0 : index
    %c0_10 = arith.constant 0 : index
    %11 = vector.load %arg4[%c0_8, %c0_9, %c0_10] : memref<1x128x128xf32, #tpu.memory_space<vmem>>, vector<1x128x128xf32>
    %12 = vector.shape_cast %11 : vector<1x128x128xf32> to vector<128x128xf32>
    %cst_11 = arith.constant dense<0.000000e+00> : vector<8x128xf32>
    %13 = tpu.matmul %3, %12, %cst_11 {dimension_numbers = #tpu.dot_dimension_numbers<[1], [0], [0], [1], [0, 0, 1, 1], [], []>} : vector<8x128xf32>, vector<128x128xf32>, vector<8x128xf32> -> vector<8x128xf32>
    %c0_12 = arith.constant 0 : index
    %c0_13 = arith.constant 0 : index
    %c0_14 = arith.constant 0 : index
    %14 = vector.load %arg6[%c0_12, %c0_13, %c0_14] : memref<1x1x128xf32, #tpu.memory_space<vmem>>, vector<1x1x128xf32>
    %15 = vector.shape_cast %14 : vector<1x1x128xf32> to vector<1x128xf32>
    %16 = vector.broadcast %15 : vector<1x128xf32> to vector<8x128xf32>
    %17 = arith.addf %13, %16 : vector<8x128xf32>
    %cst_15 = arith.constant 0.000000e+00 : f32
    %18 = vector.broadcast %cst_15 : f32 to vector<8x128xf32>
    %19 = arith.maximumf %10, %18 : vector<8x128xf32>
    %20 = arith.negf %17 : vector<8x128xf32>
    %21 = math.exp %20 : vector<8x128xf32>
    %cst_16 = arith.constant 1.000000e+00 : f32
    %22 = vector.broadcast %cst_16 : f32 to vector<8x128xf32>
    %23 = arith.addf %22, %21 : vector<8x128xf32>
    %24 = arith.divf %22, %23 : vector<8x128xf32>
    %25 = arith.subf %3, %19 : vector<8x128xf32>
    %26 = arith.mulf %24, %25 : vector<8x128xf32>
    %27 = arith.addf %19, %26 : vector<8x128xf32>
    %c0_17 = arith.constant 0 : index
    %c0_18 = arith.constant 0 : index
    %28 = vector.load %arg8[%c0_17, %c0_18] : memref<8x128xf32, #tpu.memory_space<vmem>>, vector<8x128xf32>
    tpu.vector_store %arg8[%c0_17, %c0_18], %27 {strides = array<i32>} : memref<8x128xf32, #tpu.memory_space<vmem>>, vector<8x128xf32>,
    %c1_i32 = arith.constant 1 : i32
    %29 = arith.cmpi eq, %arg1, %c1_i32 : i32
    %30 = arith.extui %29 : i1 to i32
    %c0_i32_19 = arith.constant 0 : i32
    %31 = arith.cmpi ne, %30, %c0_i32_19 : i32
    scf.if %31 {
      %c0_20 = arith.constant 0 : index
      %c0_21 = arith.constant 0 : index
      %32 = vector.load %arg7[%c0_20, %c0_21] : memref<8x128xf32, #tpu.memory_space<vmem>>, vector<8x128xf32>
      tpu.vector_store %arg7[%c0_20, %c0_21], %27 {strides = array<i32>} : memref<8x128xf32, #tpu.memory_space<vmem>>, vector<8x128xf32>,
    } else {
    }
    return
  }
  func.func @transform_0(%arg0: i32, %arg1: i32) -> (i32, i32) {
    %c0_i32 = arith.constant 0 : i32
    %c0_i32_0 = arith.constant 0 : i32
    return %arg0, %c0_i32 : i32, i32
  }
  func.func @transform_1(%arg0: i32, %arg1: i32) -> (i32, i32, i32) {
    %c0_i32 = arith.constant 0 : i32
    %c0_i32_0 = arith.constant 0 : i32
    %c0_i32_1 = arith.constant 0 : i32
    return %arg1, %c0_i32, %c0_i32_0 : i32, i32, i32
  }
  func.func @transform_2(%arg0: i32, %arg1: i32) -> (i32, i32, i32) {
    %c0_i32 = arith.constant 0 : i32
    %c0_i32_0 = arith.constant 0 : i32
    %c0_i32_1 = arith.constant 0 : i32
    return %arg1, %c0_i32, %c0_i32_0 : i32, i32, i32
  }
  func.func @transform_3(%arg0: i32, %arg1: i32) -> (i32, i32, i32) {
    %c0_i32 = arith.constant 0 : i32
    %c0_i32_0 = arith.constant 0 : i32
    %c0_i32_1 = arith.constant 0 : i32
    return %arg1, %c0_i32, %c0_i32_0 : i32, i32, i32
  }
  func.func @transform_4(%arg0: i32, %arg1: i32) -> (i32, i32, i32) {
    %c0_i32 = arith.constant 0 : i32
    %c0_i32_0 = arith.constant 0 : i32
    %c0_i32_1 = arith.constant 0 : i32
    return %arg1, %c0_i32, %c0_i32_0 : i32, i32, i32
  }
  func.func @transform_5(%arg0: i32, %arg1: i32) -> (i32, i32) {
    %c0_i32 = arith.constant 0 : i32
    %c0_i32_0 = arith.constant 0 : i32
    return %arg0, %c0_i32 : i32, i32
  }
}

</mosaic_0001>

<llo_original>
// kernel: tpu_custom_call.1
$region0: #{tpu_custom_call.1}
  #allocation0 [shape = 'u32[]', space=smem, size = 0x4, offset = 0x4, fixed_abs, tag = 'smem constant byte address 0x4 - core index']
  #allocation1 [shape = 'u32[144,128]{1,0:T(1,128)}', space=vmem, size = 0x12000, scoped, tag = 'internal scratch']
  #allocation2 [shape = 'f32[8,128]{1,0:T(8,128)}', space=vmem, size = 0x1000, scoped, tag = 'scratch operand']
  %s0 = inlined_call_operand.hbm [shape: f32[8,128], index: 0, kind: input, shape index: {}]
  %s1 = inlined_call_operand.hbm [shape: f32[2,128,128], index: 1, kind: input, shape index: {}]
  %s2 = inlined_call_operand.hbm [shape: f32[2,128,128], index: 2, kind: input, shape index: {}]
  %s3 = inlined_call_operand.vmem [shape: f32[2,1,128], index: 3, kind: input, shape index: {}]
  %s4 = inlined_call_operand.vmem [shape: f32[2,1,128], index: 4, kind: input, shape index: {}]
  %s5 = inlined_call_operand.hbm [shape: f32[8,128], index: 5, kind: output, shape index: {}]
  %s6 = sld [smem:[#allocation0]]
  $region73: #{tpu_custom_call.1} parent=0
    _
  %s8 = ssub.s32 1, %s6
  %s9 = scalar_select 0, %s8, %s6
  $region1: #{tpu_custom_call.1} parent=0
    #allocation3 [shape = 'u8[4096]{0}', space=vmem, size = 0x1000, scoped, tag = 'input window, operand 0, single buffered']
    #allocation4 [shape = 's32[2]{0}', space=sflag, size = 0x8, scoped, tag = 'scoped memory for tpu_custom_call.1']
    #allocation5 [shape = 's32[2]{0}', space=sflag, size = 0x8, scoped, tag = 'scoped memory for tpu_custom_call.1']
    #allocation6 [shape = 'u8[131072]{0}', space=vmem, size = 0x20000, scoped, tag = 'input window, operand 1']
    #allocation7 [shape = 's32[2]{0}', space=sflag, size = 0x8, scoped, tag = 'scoped memory for tpu_custom_call.1']
    #allocation8 [shape = 'u8[131072]{0}', space=vmem, size = 0x20000, scoped, tag = 'input window, operand 2']
    #allocation9 [shape = 'u8[4096]{0}', space=vmem, size = 0x1000, scoped, tag = 'output window, operand 0, single buffered']
    %10 = vsyncpa [#allocation4], 0
    %11 = vsyncpa [#allocation7], 0
    %s12 = scalar_lea.sflag [#allocation7], 1
    %13 = vsyncpa %s12, 0
    %14 = vsyncpa [#allocation5], 0
    loop: start=0, step=1, limit=4
    $region2: #{tpu_custom_call.1} parent=1 // loop_pre_header
      _
    $region3: #{tpu_custom_call.1} parent=1 // loop_header
      %s16 = sphi 0, %s20
      %p17 = scmp.ge.s32.totalorder %s16, 4
      %s23 = sphi 0, %s35
      %s24 = sphi 0, %s31
      %s25 = sphi 0, %s23
      %s26 = sphi 0, %s24
      %s27 = sphi 0, %s25
      %s28 = sphi 0, %s26
      %s38 = sphi 0, %s40
      %s41 = sphi 0, %s38
      %s42 = sphi 0, %s41
      %s58 = sphi 0, %s42
      %s64 = sphi 0, %s66
      %s67 = sphi 0, %s64
      %s68 = sphi 0, %s67
      %s84 = sphi 0, %s68
      %s90 = sphi 0, %s92
      %s93 = sphi 0, %s90
      %s94 = sphi 0, %s93
      %s110 = sphi 0, %s94
      %s116 = sphi 0, %s118
      %s119 = sphi 0, %s116
      %s120 = sphi 0, %s119
      %s136 = sphi 0, %s120
      %s142 = sphi 0, %s144
      %s145 = sphi 0, %s142
      %s146 = sphi 0, %s145
      %s162 = sphi 0, %s146
      %s168 = sphi 0, %s170
      %s171 = sphi 0, %s168
      %s172 = sphi 0, %s171
      %s188 = sphi 0, %s172
    $region4: #{tpu_custom_call.1} parent=1 // loop_header_branch
      %19 = sbr.rel (%p17) target = $region8
    $region5: #{tpu_custom_call.1} parent=1 // loop_body
      %s21 = ssub.s32 %s16, 1
      %s22 = ssub.s32 %s16, 2
      %s29 = sadd.s32 1, %s24
      %p30 = scmp.ge.s32.totalorder %s29, 2
      %s31 = scalar_select %p30, 0, %s29
      %s32 = sadd.s32 1, %s23
      %s33 = scalar_select %p30, %s32, %s23
      %p34 = scmp.ge.s32.totalorder %s33, 1
      %s35 = scalar_select %p34, 0, %s33
      %s36 = ssub.s32 %s23, %s35
      %p37 = scmp.eq.s32.totalorder %s36, 0
      %s39 = sadd.s32 %s38, 1
      %s40 = scalar_select %p37, %s38, %s39
      %p43 = pneg %p37
      %p44 = scmp.eq.s32.totalorder %s16, 1
      %p45 = por %p43, %p44
      %p46 = scmp.ne.s32.totalorder %s38, %s41
      %p47 = scmp.eq.s32.totalorder %s16, 0
      %p48 = por %p46, %p47
      %p49 = scmp.ne.s32.totalorder %s38, %s41
      %p50 = scmp.eq.s32.totalorder %s21, 1
      %p51 = por %p49, %p50
      %p52 = scmp.ne.s32.totalorder %s41, %s42
      %p53 = scmp.eq.s32.totalorder %s21, 0
      %p54 = por %p52, %p53
      %p55 = scmp.ne.s32.totalorder %s41, %s42
      %p56 = scmp.eq.s32.totalorder %s22, 1
      %p57 = por %p55, %p56
      %p59 = scmp.ne.s32.totalorder %s42, %s58
      %p60 = scmp.eq.s32.totalorder %s22, 0
      %p61 = por %p59, %p60
      %s62 = ssub.s32 %s24, %s31
      %p63 = scmp.eq.s32.totalorder %s62, 0
      %s65 = sadd.s32 %s64, 1
      %s66 = scalar_select %p63, %s64, %s65
      %p69 = pneg %p63
      %p70 = scmp.eq.s32.totalorder %s16, 1
      %p71 = por %p69, %p70
      %p72 = scmp.ne.s32.totalorder %s64, %s67
      %p73 = scmp.eq.s32.totalorder %s16, 0
      %p74 = por %p72, %p73
      %p75 = scmp.ne.s32.totalorder %s64, %s67
      %p76 = scmp.eq.s32.totalorder %s21, 1
      %p77 = por %p75, %p76
      %p78 = scmp.ne.s32.totalorder %s67, %s68
      %p79 = scmp.eq.s32.totalorder %s21, 0
      %p80 = por %p78, %p79
      %p81 = scmp.ne.s32.totalorder %s67, %s68
      %p82 = scmp.eq.s32.totalorder %s22, 1
      %p83 = por %p81, %p82
      %p85 = scmp.ne.s32.totalorder %s68, %s84
      %p86 = scmp.eq.s32.totalorder %s22, 0
      %p87 = por %p85, %p86
      %s88 = ssub.s32 %s24, %s31
      %p89 = scmp.eq.s32.totalorder %s88, 0
      %s91 = sadd.s32 %s90, 1
      %s92 = scalar_select %p89, %s90, %s91
      %p95 = pneg %p89
      %p96 = scmp.eq.s32.totalorder %s16, 1
      %p97 = por %p95, %p96
      %p98 = scmp.ne.s32.totalorder %s90, %s93
      %p99 = scmp.eq.s32.totalorder %s16, 0
      %p100 = por %p98, %p99
      %p101 = scmp.ne.s32.totalorder %s90, %s93
      %p102 = scmp.eq.s32.totalorder %s21, 1
      %p103 = por %p101, %p102
      %p104 = scmp.ne.s32.totalorder %s93, %s94
      %p105 = scmp.eq.s32.totalorder %s21, 0
      %p106 = por %p104, %p105
      %p107 = scmp.ne.s32.totalorder %s93, %s94
      %p108 = scmp.eq.s32.totalorder %s22, 1
      %p109 = por %p107, %p108
      %p111 = scmp.ne.s32.totalorder %s94, %s110
      %p112 = scmp.eq.s32.totalorder %s22, 0
      %p113 = por %p111, %p112
      %s114 = ssub.s32 %s24, %s31
      %p115 = scmp.eq.s32.totalorder %s114, 0
      %s117 = sadd.s32 %s116, 1
      %s118 = scalar_select %p115, %s116, %s117
      %p121 = pneg %p115
      %p122 = scmp.eq.s32.totalorder %s16, 1
      %p123 = por %p121, %p122
      %p124 = scmp.ne.s32.totalorder %s116, %s119
      %p125 = scmp.eq.s32.totalorder %s16, 0
      %p126 = por %p124, %p125
      %p127 = scmp.ne.s32.totalorder %s116, %s119
      %p128 = scmp.eq.s32.totalorder %s21, 1
      %p129 = por %p127, %p128
      %p130 = scmp.ne.s32.totalorder %s119, %s120
      %p131 = scmp.eq.s32.totalorder %s21, 0
      %p132 = por %p130, %p131
      %p133 = scmp.ne.s32.totalorder %s119, %s120
      %p134 = scmp.eq.s32.totalorder %s22, 1
      %p135 = por %p133, %p134
      %p137 = scmp.ne.s32.totalorder %s120, %s136
      %p138 = scmp.eq.s32.totalorder %s22, 0
      %p139 = por %p137, %p138
      %s140 = ssub.s32 %s24, %s31
      %p141 = scmp.eq.s32.totalorder %s140, 0
      %s143 = sadd.s32 %s142, 1
      %s144 = scalar_select %p141, %s142, %s143
      %p147 = pneg %p141
      %p148 = scmp.eq.s32.totalorder %s16, 1
      %p149 = por %p147, %p148
      %p150 = scmp.ne.s32.totalorder %s142, %s145
      %p151 = scmp.eq.s32.totalorder %s16, 0
      %p152 = por %p150, %p151
      %p153 = scmp.ne.s32.totalorder %s142, %s145
      %p154 = scmp.eq.s32.totalorder %s21, 1
      %p155 = por %p153, %p154
      %p156 = scmp.ne.s32.totalorder %s145, %s146
      %p157 = scmp.eq.s32.totalorder %s21, 0
      %p158 = por %p156, %p157
      %p159 = scmp.ne.s32.totalorder %s145, %s146
      %p160 = scmp.eq.s32.totalorder %s22, 1
      %p161 = por %p159, %p160
      %p163 = scmp.ne.s32.totalorder %s146, %s162
      %p164 = scmp.eq.s32.totalorder %s22, 0
      %p165 = por %p163, %p164
      %s166 = ssub.s32 %s23, %s35
      %p167 = scmp.eq.s32.totalorder %s166, 0
      %s169 = sadd.s32 %s168, 1
      %s170 = scalar_select %p167, %s168, %s169
      %p173 = pneg %p167
      %p174 = scmp.eq.s32.totalorder %s16, 1
      %p175 = por %p173, %p174
      %p176 = scmp.ne.s32.totalorder %s168, %s171
      %p177 = scmp.eq.s32.totalorder %s16, 0
      %p178 = por %p176, %p177
      %p179 = scmp.ne.s32.totalorder %s168, %s171
      %p180 = scmp.eq.s32.totalorder %s21, 1
      %p181 = por %p179, %p180
      %p182 = scmp.ne.s32.totalorder %s171, %s172
      %p183 = scmp.eq.s32.totalorder %s21, 0
      %p184 = por %p182, %p183
      %p185 = scmp.ne.s32.totalorder %s171, %s172
      %p186 = scmp.eq.s32.totalorder %s22, 1
      %p187 = por %p185, %p186
      %p189 = scmp.ne.s32.totalorder %s172, %s188
      %p190 = scmp.eq.s32.totalorder %s22, 0
      %p191 = por %p189, %p190
      %p192 = scmp.le.s32.totalorder 1, %s16
      %p193 = scmp.lt.s32.totalorder %s16, 3
      %p194 = pnand %p192, %p193
      %p195 = pneg %p194
      // Predicated region
      $region9: #{tpu_custom_call.1} parent=5 // pred_check
        _
      $region10: #{tpu_custom_call.1} parent=5 // pred_check_branch
        %197 = sbr.rel (%p194) target = $region12
      $region11: #{tpu_custom_call.1} parent=5 // pred_region
        %s198 = ssub.s32 %s16, 1
        // Predicated region
        $region13: #{tpu_custom_call.1} parent=11 // pred_check
          %p199 = pneg %p54
        $region14: #{tpu_custom_call.1} parent=11 // pred_check_branch
          %201 = sbr.rel (%p199) target = $region16
        $region15: #{tpu_custom_call.1} parent=11 // pred_region
          %s203 = ssub.s32 128, 128
          %204 = vsyncadd [#allocation4], %s203
          %s205 = smul.addr %s25, 128
          %s206 = scalar_lea.hbm %s0, %s205
          %s208 = sshll.u32 [#allocation3], 4
          %s209 = int_to_ptr.vmem [resolvable:$true] %s208
          %211 = dma.hbm_to_vmem [thread:$0]  %s206, 128, %s209, [#allocation4]
        $region16: #{tpu_custom_call.1} parent=11 // pred_fallthru
          _
      $region12: #{tpu_custom_call.1} parent=5 // pred_fallthru
        _
      %p212 = scmp.lt.s32.totalorder %s16, 2
      // Predicated region
      $region17: #{tpu_custom_call.1} parent=5 // pred_check
        %p213 = pneg %p212
      $region18: #{tpu_custom_call.1} parent=5 // pred_check_branch
        %215 = sbr.rel (%p213) target = $region20
      $region19: #{tpu_custom_call.1} parent=5 // pred_region
        // Predicated region
        $region21: #{tpu_custom_call.1} parent=19 // pred_check
          %p216 = pneg %p74
        $region22: #{tpu_custom_call.1} parent=19 // pred_check_branch
          %218 = sbr.rel (%p216) target = $region24
        $region23: #{tpu_custom_call.1} parent=19 // pred_region
          %s219 = sand.u32 %s16, 1
          %s220 = scalar_lea.sflag [#allocation7], %s219
          %s221 = sand.u32 %s64, 1
          %s222 = smul.addr %s221, 128
          %s223 = scalar_lea.vmem [#allocation6], %s222
          %s225 = ssub.s32 2048, 2048
          %226 = vsyncadd %s220, %s225
          %s227 = smul.addr %s24, 16
          %s228 = smul.addr %s227, 128
          %s229 = scalar_lea.hbm %s1, %s228
          %s230 = sshll.u32 %s223, 4
          %s231 = int_to_ptr.vmem [resolvable:$true] %s230
          %236 = dma.hbm_to_vmem [thread:$0]  %s229, 2048, %s231, %s220, 128, 128, 8
        $region24: #{tpu_custom_call.1} parent=19 // pred_fallthru
          _
        // Predicated region
        $region25: #{tpu_custom_call.1} parent=19 // pred_check
          %p237 = pneg %p100
        $region26: #{tpu_custom_call.1} parent=19 // pred_check_branch
          %239 = sbr.rel (%p237) target = $region28
        $region27: #{tpu_custom_call.1} parent=19 // pred_region
          %s240 = sand.u32 %s16, 1
          %s241 = scalar_lea.sflag [#allocation7], %s240
          %s242 = sand.u32 %s90, 1
          %s243 = smul.addr %s242, 128
          %s244 = scalar_lea.vmem [#allocation8], %s243
          %s246 = ssub.s32 2048, 2048
          %247 = vsyncadd %s241, %s246
          %s248 = smul.addr %s24, 16
          %s249 = smul.addr %s248, 128
          %s250 = scalar_lea.hbm %s2, %s249
          %s251 = sshll.u32 %s244, 4
          %s252 = int_to_ptr.vmem [resolvable:$true] %s251
          %257 = dma.hbm_to_vmem [thread:$0]  %s250, 2048, %s252, %s241, 128, 128, 8
        $region28: #{tpu_custom_call.1} parent=19 // pred_fallthru
          _
        // Predicated region
        $region29: #{tpu_custom_call.1} parent=19 // pred_check
          %p258 = pneg %p126
        $region30: #{tpu_custom_call.1} parent=19 // pred_check_branch
          %260 = sbr.rel (%p258) target = $region32
        $region31: #{tpu_custom_call.1} parent=19 // pred_region
          %p261 = scmp.lt.s32.totalorder %s24, 1
          %s262 = scalar_select %p261, %s24, 1
          %s263 = scalar_lea.vmem %s3, %s262
        $region32: #{tpu_custom_call.1} parent=19 // pred_fallthru
          _
        // Predicated region
        $region33: #{tpu_custom_call.1} parent=19 // pred_check
          %p264 = pneg %p152
        $region34: #{tpu_custom_call.1} parent=19 // pred_check_branch
          %266 = sbr.rel (%p264) target = $region36
        $region35: #{tpu_custom_call.1} parent=19 // pred_region
          %p267 = scmp.lt.s32.totalorder %s24, 1
          %s268 = scalar_select %p267, %s24, 1
          %s269 = scalar_lea.vmem %s4, %s268
        $region36: #{tpu_custom_call.1} parent=19 // pred_fallthru
          _
      $region20: #{tpu_custom_call.1} parent=5 // pred_fallthru
        _
      %p270 = scmp.le.s32.totalorder 1, %s16
      %p271 = scmp.lt.s32.totalorder %s16, 3
      %p272 = pnand %p270, %p271
      %p273 = pneg %p272
      // Predicated region
      $region37: #{tpu_custom_call.1} parent=5 // pred_check
        _
      $region38: #{tpu_custom_call.1} parent=5 // pred_check_branch
        %275 = sbr.rel (%p272) target = $region40
      $region39: #{tpu_custom_call.1} parent=5 // pred_region
        %s276 = ssub.s32 %s16, 1
        // Predicated region
        $region41: #{tpu_custom_call.1} parent=39 // pred_check
          %p277 = pneg %p54
        $region42: #{tpu_custom_call.1} parent=39 // pred_check_branch
          %279 = sbr.rel (%p277) target = $region44
        $region43: #{tpu_custom_call.1} parent=39 // pred_region
          %280 = dma.done [#allocation4], 128
        $region44: #{tpu_custom_call.1} parent=39 // pred_fallthru
          _
        %s281 = sand.u32 %s21, 1
        %s282 = scalar_lea.sflag [#allocation7], %s281
        %s283 = sand.u32 %s67, 1
        %s284 = smul.addr %s283, 128
        %s285 = scalar_lea.vmem [#allocation6], %s284
        // Predicated region
        $region45: #{tpu_custom_call.1} parent=39 // pred_check
          %p286 = pneg %p80
        $region46: #{tpu_custom_call.1} parent=39 // pred_check_branch
          %288 = sbr.rel (%p286) target = $region48
        $region47: #{tpu_custom_call.1} parent=39 // pred_region
          %289 = dma.done %s282, 2048
        $region48: #{tpu_custom_call.1} parent=39 // pred_fallthru
          _
        %s290 = sand.u32 %s21, 1
        %s291 = scalar_lea.sflag [#allocation7], %s290
        %s292 = sand.u32 %s93, 1
        %s293 = smul.addr %s292, 128
        %s294 = scalar_lea.vmem [#allocation8], %s293
        // Predicated region
        $region49: #{tpu_custom_call.1} parent=39 // pred_check
          %p295 = pneg %p106
        $region50: #{tpu_custom_call.1} parent=39 // pred_check_branch
          %297 = sbr.rel (%p295) target = $region52
        $region51: #{tpu_custom_call.1} parent=39 // pred_region
          %298 = dma.done %s291, 2048
        $region52: #{tpu_custom_call.1} parent=39 // pred_fallthru
          _
        %p299 = pneg %p54
        %p300 = pneg %p51
        %s301 = sand.u32 %s21, 1
        %s302 = scalar_lea.sflag [#allocation7], %s301
        %s303 = sand.u32 %s67, 1
        %s304 = smul.addr %s303, 128
        %s305 = scalar_lea.vmem [#allocation6], %s304
        %p306 = pneg %p80
        %p307 = pneg %p77
        %s308 = sand.u32 %s21, 1
        %s309 = scalar_lea.sflag [#allocation7], %s308
        %s310 = sand.u32 %s93, 1
        %s311 = smul.addr %s310, 128
        %s312 = scalar_lea.vmem [#allocation8], %s311
        %p313 = pneg %p106
        %p314 = pneg %p103
        %p315 = scmp.lt.s32.totalorder %s26, 1
        %s316 = scalar_select %p315, %s26, 1
        %s317 = scalar_lea.vmem %s3, %s316
        %p318 = pneg %p132
        %p319 = pneg %p129
        %p320 = scmp.lt.s32.totalorder %s26, 1
        %s321 = scalar_select %p320, %s26, 1
        %s322 = scalar_lea.vmem %s4, %s321
        %p323 = pneg %p158
        %p324 = pneg %p155
        %p325 = pneg %p184
        %p326 = pneg %p181
        %p327 = scmp.lt.s32.totalorder %s26, 1
        %s328 = scalar_select %p327, %s26, 1
        %s329 = scalar_lea.vmem %s3, %s328
        %p330 = scmp.lt.s32.totalorder %s26, 1
        %s331 = scalar_select %p330, %s26, 1
        %s332 = scalar_lea.vmem %s4, %s331
        %p333 = scmp.eq.s32.totalorder %s26, 0
        // Predicated region
        $region53: #{tpu_custom_call.1} parent=39 // pred_check
          %p334 = pneg %p333
        $region54: #{tpu_custom_call.1} parent=39 // pred_check_branch
          %336 = sbr.rel (%p334) target = $region56
        $region55: #{tpu_custom_call.1} parent=39 // pred_region
          %v337 = vld [vmem:[#allocation3] sm:$0xff]
          %338 = vst [vmem:[#allocation2] sm:$0xff] %v337
        $region56: #{tpu_custom_call.1} parent=39 // pred_fallthru
          _
        %v339 = vld [vmem:[#allocation2] sm:$0xff]
        %v340 = vld [vmem:[%s285] sm:$0xff]
        %v341 = vld [vmem:[%s285 + $0x8] sm:$0xff]
        %v342 = vld [vmem:[%s285 + $0x10] sm:$0xff]
        %v343 = vld [vmem:[%s285 + $0x18] sm:$0xff]
        %v344 = vld [vmem:[%s285 + $0x20] sm:$0xff]
        %v345 = vld [vmem:[%s285 + $0x28] sm:$0xff]
        %v346 = vld [vmem:[%s285 + $0x30] sm:$0xff]
        %v347 = vld [vmem:[%s285 + $0x38] sm:$0xff]
        %v348 = vld [vmem:[%s285 + $0x40] sm:$0xff]
        %v349 = vld [vmem:[%s285 + $0x48] sm:$0xff]
        %v350 = vld [vmem:[%s285 + $0x50] sm:$0xff]
        %v351 = vld [vmem:[%s285 + $0x58] sm:$0xff]
        %v352 = vld [vmem:[%s285 + $0x60] sm:$0xff]
        %v353 = vld [vmem:[%s285 + $0x68] sm:$0xff]
        %v354 = vld [vmem:[%s285 + $0x70] sm:$0xff]
        %v355 = vld [vmem:[%s285 + $0x78] sm:$0xff]
        %v356 = vld [vmem:[%s329] sm:$0x1]
        %v358 = vlaneseq
        %v359 = vshrl.u32 %v358, 7
        %v360 = vsub.s32 0, %v359
        %v361 = vrot.slane %v356, %v360
        %363 = vmatprep.subr.mxu0 0.0
        %364 = vmatpush1.msra.mxu0 %v340
        %365 = vmatprep.subr.mxu0 0.0
        %366 = vmatpush1.msra.mxu0 %v341
        %367 = vmatprep.subr.mxu0 0.0
        %368 = vmatpush1.msra.mxu0 %v342
        %369 = vmatprep.subr.mxu0 0.0
        %370 = vmatpush1.msra.mxu0 %v343
        %371 = vmatprep.subr.mxu0 0.0
        %372 = vmatpush1.msra.mxu0 %v344
        %373 = vmatprep.subr.mxu0 0.0
        %374 = vmatpush1.msra.mxu0 %v345
        %375 = vmatprep.subr.mxu0 0.0
        %376 = vmatpush1.msra.mxu0 %v346
        %377 = vmatprep.subr.mxu0 0.0
        %378 = vmatpush1.msra.mxu0 %v347
        %379 = vmatprep.subr.mxu0 0.0
        %380 = vmatpush1.msra.mxu0 %v348
        %381 = vmatprep.subr.mxu0 0.0
        %382 = vmatpush1.msra.mxu0 %v349
        %383 = vmatprep.subr.mxu0 0.0
        %384 = vmatpush1.msra.mxu0 %v350
        %385 = vmatprep.subr.mxu0 0.0
        %386 = vmatpush1.msra.mxu0 %v351
        %387 = vmatprep.subr.mxu0 0.0
        %388 = vmatpush1.msra.mxu0 %v352
        %389 = vmatprep.subr.mxu0 0.0
        %390 = vmatpush1.msra.mxu0 %v353
        %391 = vmatprep.subr.mxu0 0.0
        %392 = vmatpush1.msra.mxu0 %v354
        %393 = vmatprep.subr.mxu0 0.0
        %394 = vmatpush1.msra.mxu0 %v355
        %395 = vmatprep.subr.mxu0 0.0
        %396 = vmatpush1.msra.mxu0 0.0
        %397 = vmatprep.subr.mxu0 0.0
        %398 = vmatpush1.msra.mxu0 0.0
        %399 = vmatprep.subr.mxu0 0.0
        %400 = vmatpush1.msra.mxu0 0.0
        %401 = vmatprep.subr.mxu0 0.0
        %402 = vmatpush1.msra.mxu0 0.0
        %403 = vmatprep.subr.mxu0 0.0
        %404 = vmatpush1.msra.mxu0 0.0
        %405 = vmatprep.subr.mxu0 0.0
        %406 = vmatpush1.msra.mxu0 0.0
        %407 = vmatprep.subr.mxu0 0.0
        %408 = vmatpush1.msra.mxu0 0.0
        %409 = vmatprep.subr.mxu0 0.0
        %410 = vmatpush1.msra.mxu0 0.0
        %411 = vmatprep.subr.mxu0 0.0
        %412 = vmatpush1.msra.mxu0 0.0
        %413 = vmatprep.subr.mxu0 0.0
        %414 = vmatpush1.msra.mxu0 0.0
        %415 = vmatprep.subr.mxu0 0.0
        %416 = vmatpush1.msra.mxu0 0.0
        %417 = vmatprep.subr.mxu0 0.0
        %418 = vmatpush1.msra.mxu0 0.0
        %419 = vmatprep.subr.mxu0 0.0
        %420 = vmatpush1.msra.mxu0 0.0
        %421 = vmatprep.subr.mxu0 0.0
        %422 = vmatpush1.msra.mxu0 0.0
        %423 = vmatprep.subr.mxu0 0.0
        %424 = vmatpush1.msra.mxu0 0.0
        %425 = vmatprep.subr.mxu0 0.0
        %426 = vmatpush1.msra.mxu0 0.0
        %427 = vmatprep.mubr.f32.mxu0 0.0
        %428 = vmatmul.mubr.f32.gmra.mrb[0].mxu0 %v339
        %v429 = vpop.f32.mrb[0].mxu0
        %v430 = vadd.f32 %v361, %v429
        %v431 = vpop.f32.mrb[0].mxu0
        %432 = vdwg.mxu0
        %v433 = vld [vmem:[%s294] sm:$0xff]
        %v434 = vld [vmem:[%s294 + $0x8] sm:$0xff]
        %v435 = vld [vmem:[%s294 + $0x10] sm:$0xff]
        %v436 = vld [vmem:[%s294 + $0x18] sm:$0xff]
        %v437 = vld [vmem:[%s294 + $0x20] sm:$0xff]
        %v438 = vld [vmem:[%s294 + $0x28] sm:$0xff]
        %v439 = vld [vmem:[%s294 + $0x30] sm:$0xff]
        %v440 = vld [vmem:[%s294 + $0x38] sm:$0xff]
        %v441 = vld [vmem:[%s294 + $0x40] sm:$0xff]
        %v442 = vld [vmem:[%s294 + $0x48] sm:$0xff]
        %v443 = vld [vmem:[%s294 + $0x50] sm:$0xff]
        %v444 = vld [vmem:[%s294 + $0x58] sm:$0xff]
        %v445 = vld [vmem:[%s294 + $0x60] sm:$0xff]
        %v446 = vld [vmem:[%s294 + $0x68] sm:$0xff]
        %v447 = vld [vmem:[%s294 + $0x70] sm:$0xff]
        %v448 = vld [vmem:[%s294 + $0x78] sm:$0xff]
        %v449 = vld [vmem:[%s332] sm:$0x1]
        %v451 = vlaneseq
        %v452 = vshrl.u32 %v451, 7
        %v453 = vsub.s32 0, %v452
        %v454 = vrot.slane %v449, %v453
        %456 = vmatprep.subr.mxu0 0.0
        %457 = vmatpush1.msra.mxu0 %v433
        %458 = vmatprep.subr.mxu0 0.0
        %459 = vmatpush1.msra.mxu0 %v434
        %460 = vmatprep.subr.mxu0 0.0
        %461 = vmatpush1.msra.mxu0 %v435
        %462 = vmatprep.subr.mxu0 0.0
        %463 = vmatpush1.msra.mxu0 %v436
        %464 = vmatprep.subr.mxu0 0.0
        %465 = vmatpush1.msra.mxu0 %v437
        %466 = vmatprep.subr.mxu0 0.0
        %467 = vmatpush1.msra.mxu0 %v438
        %468 = vmatprep.subr.mxu0 0.0
        %469 = vmatpush1.msra.mxu0 %v439
        %470 = vmatprep.subr.mxu0 0.0
        %471 = vmatpush1.msra.mxu0 %v440
        %472 = vmatprep.subr.mxu0 0.0
        %473 = vmatpush1.msra.mxu0 %v441
        %474 = vmatprep.subr.mxu0 0.0
        %475 = vmatpush1.msra.mxu0 %v442
        %476 = vmatprep.subr.mxu0 0.0
        %477 = vmatpush1.msra.mxu0 %v443
        %478 = vmatprep.subr.mxu0 0.0
        %479 = vmatpush1.msra.mxu0 %v444
        %480 = vmatprep.subr.mxu0 0.0
        %481 = vmatpush1.msra.mxu0 %v445
        %482 = vmatprep.subr.mxu0 0.0
        %483 = vmatpush1.msra.mxu0 %v446
        %484 = vmatprep.subr.mxu0 0.0
        %485 = vmatpush1.msra.mxu0 %v447
        %486 = vmatprep.subr.mxu0 0.0
        %487 = vmatpush1.msra.mxu0 %v448
        %488 = vmatprep.subr.mxu0 0.0
        %489 = vmatpush1.msra.mxu0 0.0
        %490 = vmatprep.subr.mxu0 0.0
        %491 = vmatpush1.msra.mxu0 0.0
        %492 = vmatprep.subr.mxu0 0.0
        %493 = vmatpush1.msra.mxu0 0.0
        %494 = vmatprep.subr.mxu0 0.0
        %495 = vmatpush1.msra.mxu0 0.0
        %496 = vmatprep.subr.mxu0 0.0
        %497 = vmatpush1.msra.mxu0 0.0
        %498 = vmatprep.subr.mxu0 0.0
        %499 = vmatpush1.msra.mxu0 0.0
        %500 = vmatprep.subr.mxu0 0.0
        %501 = vmatpush1.msra.mxu0 0.0
        %502 = vmatprep.subr.mxu0 0.0
        %503 = vmatpush1.msra.mxu0 0.0
        %504 = vmatprep.subr.mxu0 0.0
        %505 = vmatpush1.msra.mxu0 0.0
        %506 = vmatprep.subr.mxu0 0.0
        %507 = vmatpush1.msra.mxu0 0.0
        %508 = vmatprep.subr.mxu0 0.0
        %509 = vmatpush1.msra.mxu0 0.0
        %510 = vmatprep.subr.mxu0 0.0
        %511 = vmatpush1.msra.mxu0 0.0
        %512 = vmatprep.subr.mxu0 0.0
        %513 = vmatpush1.msra.mxu0 0.0
        %514 = vmatprep.subr.mxu0 0.0
        %515 = vmatpush1.msra.mxu0 0.0
        %516 = vmatprep.subr.mxu0 0.0
        %517 = vmatpush1.msra.mxu0 0.0
        %518 = vmatprep.subr.mxu0 0.0
        %519 = vmatpush1.msra.mxu0 0.0
        %520 = vmatprep.mubr.f32.mxu0 0.0
        %521 = vmatmul.mubr.f32.gmra.mrb[0].mxu0 %v339
        %v522 = vpop.f32.mrb[0].mxu0
        %v523 = vadd.f32 %v454, %v522
        %v524 = vpop.f32.mrb[0].mxu0
        %525 = vdwg.mxu0
        %v526 = vmax.f32 %v430, 0.0
        %v527 = vxor.u32 %v523, 2147483648
        %v528 = vmul.f32 %v527, 1.442695
        %v529 = vpow.pop %v528
        %v530 = vadd.f32 %v529, 1.0
        %v531 = vrcp.pop %v530
        %v532 = vmul.f32 1.0, %v531
        %v533 = vsub.f32 %v339, %v526
        %v534 = vmul.f32 %v532, %v533
        %v535 = vadd.f32 %v526, %v534
        %536 = vst [vmem:[#allocation2] sm:$0xff] %v535
        %p537 = scmp.eq.s32.totalorder %s26, 1
        // Predicated region
        $region57: #{tpu_custom_call.1} parent=39 // pred_check
          %p538 = pneg %p537
        $region58: #{tpu_custom_call.1} parent=39 // pred_check_branch
          %540 = sbr.rel (%p538) target = $region60
        $region59: #{tpu_custom_call.1} parent=39 // pred_region
          %541 = vst [vmem:[#allocation9] sm:$0xff] %v535
        $region60: #{tpu_custom_call.1} parent=39 // pred_fallthru
          _
        // Predicated region
        $region61: #{tpu_custom_call.1} parent=39 // pred_check
          %p542 = pneg %p181
        $region62: #{tpu_custom_call.1} parent=39 // pred_check_branch
          %544 = sbr.rel (%p542) target = $region64
        $region63: #{tpu_custom_call.1} parent=39 // pred_region
          %s546 = ssub.s32 128, 128
          %547 = vsyncadd [#allocation5], %s546
          %s548 = smul.addr %s25, 128
          %s549 = scalar_lea.hbm %s5, %s548
          %s551 = sshll.u32 [#allocation9], 4
          %s552 = int_to_ptr.vmem [resolvable:$true] %s551
          %554 = dma.vmem_to_hbm [thread:$0]  %s552, 128, %s549, [#allocation5]
        $region64: #{tpu_custom_call.1} parent=39 // pred_fallthru
          _
        // Predicated region
        $region65: #{tpu_custom_call.1} parent=39 // pred_check
          %p555 = pneg %p181
        $region66: #{tpu_custom_call.1} parent=39 // pred_check_branch
          %557 = sbr.rel (%p555) target = $region68
        $region67: #{tpu_custom_call.1} parent=39 // pred_region
          %558 = dma.done [#allocation5], 128
        $region68: #{tpu_custom_call.1} parent=39 // pred_fallthru
          _
      $region40: #{tpu_custom_call.1} parent=5 // pred_fallthru
        _
      %p559 = scmp.le.s32.totalorder 2, %s16
      // Predicated region
      $region69: #{tpu_custom_call.1} parent=5 // pred_check
        %p560 = pneg %p559
      $region70: #{tpu_custom_call.1} parent=5 // pred_check_branch
        %562 = sbr.rel (%p560) target = $region72
      $region71: #{tpu_custom_call.1} parent=5 // pred_region
        %s563 = ssub.s32 %s16, 2
      $region72: #{tpu_custom_call.1} parent=5 // pred_fallthru
        _
    $region6: #{tpu_custom_call.1} parent=1 // loop_footer
      %s20 = sadd.s32 1, %s16
    $region7: #{tpu_custom_call.1} parent=1 // loop_footer_branch
      %15 = sbr.rel target = $region3
    $region8: #{tpu_custom_call.1} parent=1 // loop_exit
      _
    %564 = vsyncpa [#allocation4], 1
    %s565 = scalar_lea.sflag [#allocation4], 1
    %566 = vsyncpa %s565, 1
    %567 = vsyncpa [#allocation7], 1
    %s568 = scalar_lea.sflag [#allocation7], 1
    %569 = vsyncpa %s568, 1
    %570 = vsyncpa [#allocation5], 1
    %s571 = scalar_lea.sflag [#allocation5], 1
    %572 = vsyncpa %s571, 1

</llo_original>
